<compile_context>
chip_gen: v5e
topology: v5e:2x2
jax: 0.10.0
libtpu: 0.0.40
codegen_flags: <defaults>
</compile_context>

<pallas_src>
import math

import jax
import jax.numpy as jnp
import numpy as np
from jax.experimental import pallas as pl
from jax.experimental.pallas import tpu as pltpu

HIDDEN = 32          # torch default is 256; small deterministic instance
HH = HIDDEN // 2     # per-branch width (hidden_size // 2)
BATCH = 128          # one full MXU pass of rows (v5e); still tiny overall
EPS = 1e-5
LANES = 128          # lane-dense width for activations / weights / output

# Packed-slab layout: W has shape (N_SLOTS, 128, 128), everything zero-padded.
#   slot 0: block-diag layer-1 weights of both branches   (rows 0..5 used)
#   slot 1: block-diag layer-2 weights of both branches   (rows 0..31 used)
#   slot 2: main-block-1 weight wm1
#   slot 3: main-block-2 weight wm2 (raw; for the folded residual term combined@wm2)
#   slot 4: wm2' = diag(sm1) @ wm2   (main-block-1 BN affine folded forward)
#   slot 5: wm3' = diag(sm2) @ wm3   (main-block-2 BN affine folded forward)
#   slot 6: bias / BN-affine rows (row indices below)
N_SLOTS = 7
_SLOT_P = 6
_B1, _S1, _T1, _B2, _S2, _T2, _BM1, _BM2, _BM3 = range(9)


# -----------------------------------------------------------------------------
# Kernel: whole forward pass in one gridless invocation, 2 packed inputs.
# -----------------------------------------------------------------------------
def _gaze_kernel(x_ref, w_ref, o_ref):
    f32 = jnp.float32
    x = x_ref[...]                       # (B, 128); lanes >= 6 ignored (w1 rows are zero)

    w1 = w_ref[0]                        # (128, 128) each, zero-padded
    w2 = w_ref[1]
    wm1 = w_ref[2]
    wm2 = w_ref[3]
    wm2p = w_ref[4]
    wm3p = w_ref[5]

    p = w_ref.at[_SLOT_P]                # (128, 128) ref view holding bias/affine rows
    b1 = p[_B1:_B1 + 1, :]               # each (1, 128); padding lanes are zero
    s1 = p[_S1:_S1 + 1, :]
    t1 = p[_T1:_T1 + 1, :]
    b2 = p[_B2:_B2 + 1, :]
    s2 = p[_S2:_S2 + 1, :]
    t2 = p[_T2:_T2 + 1, :]
    bm1 = p[_BM1:_BM1 + 1, :]
    bm2p = p[_BM2:_BM2 + 1, :]
    bm3p = p[_BM3:_BM3 + 1, :]

    # Branch layer 1 (both branches fused block-diagonally): Linear -> ReLU -> BN affine.
    h1 = jnp.maximum(jnp.dot(x, w1, preferred_element_type=f32) + b1, 0.0) * s1 + t1
    # Branch layer 2: Linear -> ReLU -> BN affine, + residual.
    h2 = jnp.maximum(jnp.dot(h1, w2, preferred_element_type=f32) + b2, 0.0) * s2 + t2
    combined = h2 + h1                   # == torch.cat([gaze_out, sphere_out], dim=1)

    # NOTE: the PyTorch module's attention head / attentive_features are
    # computed but discarded by the return value; omitted here (dead code).

    # Main block 2's linear applied to `combined` (the folded residual term);
    # depends only on `combined`, so it runs off the serial MXU chain.
    cw2 = jnp.dot(combined, wm2, preferred_element_type=f32)
    # Main block 1 Linear + ReLU (its BN affine + residual are folded into wm2p/cw2/bm2p).
    pre = jnp.maximum(jnp.dot(combined, wm1, preferred_element_type=f32) + bm1, 0.0)
    # Main block 2 Linear + ReLU (its BN affine is folded into wm3p/bm3p).
    r = jnp.maximum(jnp.dot(pre, wm2p, preferred_element_type=f32) + cw2 + bm2p, 0.0)
    # Final Linear: lane-dense (B, 128) store; lanes >= 2 are exactly zero.
    o_ref[...] = jnp.dot(r, wm3p, preferred_element_type=f32) + bm3p


def gaze_model_forward(x_padded, w_slab):
    """Fused forward.  `x_padded` is (B, 128) with the 6 features in lanes 0..5
    (remaining lanes ignored).  Returns the lane-dense (B, 128) output; lanes
    0..1 hold the (B, 2) prediction, the rest are zero."""
    B = x_padded.shape[0]
    vmem = pl.BlockSpec(memory_space=pltpu.MemorySpace.VMEM)
    cost = pl.CostEstimate(
        flops=2 * B * LANES * LANES * 6,
        transcendentals=0,
        bytes_accessed=(w_slab.size + x_padded.size + B * LANES) * 4,
    )
    # TODO(synk): for very large batches add a batch grid axis with
    # dimension_semantics=("parallel",) (2 TensorCores on v7x), keep the slab's
    # index_map pinned to block 0 so it stays VMEM-resident, and size the batch
    # tile per generation (128 rows on v5e, 256 on v6e/v7x; mind v7x's 64 MiB VMEM).
    return pl.pallas_call(
        _gaze_kernel,
        in_specs=[vmem, vmem],
        out_specs=vmem,
        out_shape=jax.ShapeDtypeStruct((B, LANES), jnp.float32),
        cost_estimate=cost,
    )(x_padded, w_slab)


def pad_features(x):
    """One-time, off-hot-path data prep: (B, 6) features -> lane-dense (B, 128)."""
    x = np.asarray(x, np.float32)
    out = np.zeros((x.shape[0], LANES), np.float32)
    out[:, : x.shape[1]] = x
    return jnp.asarray(out)


# -----------------------------------------------------------------------------
# Deterministic parameter construction (mirrors the torch module's shapes).
# -----------------------------------------------------------------------------
def _linear(key, fan_in, fan_out):
    k1, k2 = jax.random.split(key)
    bound = 1.0 / math.sqrt(fan_in)
    w = jax.random.uniform(k1, (fan_in, fan_out), jnp.float32, -bound, bound)
    b = jax.random.uniform(k2, (fan_out,), jnp.float32, -bound, bound)
    return w, b


def _batchnorm_affine(key, n):
    k1, k2 = jax.random.split(key)
    gamma = 1.0 + 0.1 * jax.random.normal(k1, (n,), jnp.float32)
    beta = 0.1 * jax.random.normal(k2, (n,), jnp.float32)
    running_mean = jnp.zeros((n,), jnp.float32)
    running_var = jnp.ones((n,), jnp.float32)
    scale = gamma / jnp.sqrt(running_var + EPS)
    shift = beta - running_mean * scale
    return scale, shift


def init_raw_params(key):
    ks = jax.random.split(key, 16)
    raw = {}
    raw['wg1'], raw['bg1'] = _linear(ks[0], 3, HH)
    raw['sg1'], raw['tg1'] = _batchnorm_affine(ks[1], HH)
    raw['wg2'], raw['bg2'] = _linear(ks[2], HH, HH)
    raw['sg2'], raw['tg2'] = _batchnorm_affine(ks[3], HH)
    raw['ws1'], raw['bs1'] = _linear(ks[4], 3, HH)
    raw['ss1'], raw['ts1'] = _batchnorm_affine(ks[5], HH)
    raw['ws2'], raw['bs2'] = _linear(ks[6], HH, HH)
    raw['ss2'], raw['ts2'] = _batchnorm_affine(ks[7], HH)
    # (attention-head weights are not materialized: unused by the return value)
    raw['wm1'], raw['bm1'] = _linear(ks[10], HIDDEN, HIDDEN)
    raw['sm1'], raw['tm1'] = _batchnorm_affine(ks[11], HIDDEN)
    raw['wm2'], raw['bm2'] = _linear(ks[12], HIDDEN, HH)
    raw['sm2'], raw['tm2'] = _batchnorm_affine(ks[13], HH)
    raw['wm3'], raw['bm3'] = _linear(ks[14], HH, 2)
    return raw


def fuse_params(raw):
    """Pack all parameters into ONE (7, 128, 128) slab (done once, off the hot path)."""
    np_ = lambda k: np.asarray(raw[k], np.float32)
    W = np.zeros((N_SLOTS, LANES, LANES), np.float32)
    # slot 0: block-diag layer 1 of both branches (input features live in lanes 0..5)
    W[0, 0:3, 0:HH] = np_('wg1')
    W[0, 3:6, HH:HIDDEN] = np_('ws1')
    # slot 1: block-diag layer 2
    W[1, 0:HH, 0:HH] = np_('wg2')
    W[1, HH:HIDDEN, HH:HIDDEN] = np_('ws2')
    # slot 2: main block 1
    W[2, 0:HIDDEN, 0:HIDDEN] = np_('wm1')
    # slot 3: main block 2 weight (raw) -- for the folded residual term combined @ wm2
    W[3, 0:HIDDEN, 0:HH] = np_('wm2')
    # slot 4: wm2' = diag(sm1) @ wm2   (post-ReLU fold => exact)
    W[4, 0:HIDDEN, 0:HH] = np_('sm1')[:, None] * np_('wm2')
    # slot 5: wm3' = diag(sm2) @ wm3   (post-ReLU fold => exact)
    W[5, 0:HH, 0:2] = np_('sm2')[:, None] * np_('wm3')
    # slot 6: bias / BN-affine rows; padding lanes stay zero, which keeps the
    # padding lanes of every activation exactly zero through the whole chain.
    P = W[_SLOT_P]
    P[_B1, :HIDDEN] = np.concatenate([np_('bg1'), np_('bs1')])
    P[_S1, :HIDDEN] = np.concatenate([np_('sg1'), np_('ss1')])
    P[_T1, :HIDDEN] = np.concatenate([np_('tg1'), np_('ts1')])
    P[_B2, :HIDDEN] = np.concatenate([np_('bg2'), np_('bs2')])
    P[_S2, :HIDDEN] = np.concatenate([np_('sg2'), np_('ss2')])
    P[_T2, :HIDDEN] = np.concatenate([np_('tg2'), np_('ts2')])
    P[_BM1, :HIDDEN] = np_('bm1')
    P[_BM2, :HH] = np_('tm1') @ np_('wm2') + np_('bm2')
    P[_BM3, :2] = np_('tm2') @ np_('wm3') + np_('bm3')
    return jnp.asarray(W)


# -----------------------------------------------------------------------------
# Plain-JAX reference (mirrors the PyTorch forward's return value 1:1).
# -----------------------------------------------------------------------------
def reference_forward(x, raw):
    def blk(h, w, b, scale, shift, residual):
        y = jnp.maximum(h @ w + b, 0.0) * scale + shift
        return y + h if residual else y

    g = blk(x[:, :3], raw['wg1'], raw['bg1'], raw['sg1'], raw['tg1'], False)
    g = blk(g, raw['wg2'], raw['bg2'], raw['sg2'], raw['tg2'], True)
    s = blk(x[:, 3:], raw['ws1'], raw['bs1'], raw['ss1'], raw['ts1'], False)
    s = blk(s, raw['ws2'], raw['bs2'], raw['ss2'], raw['ts2'], True)
    combined = jnp.concatenate([g, s], axis=1)
    # (attention + attentive_features are computed but unused by the return)
    m = blk(combined, raw['wm1'], raw['bm1'], raw['sm1'], raw['tm1'], True)
    m = blk(m, raw['wm2'], raw['bm2'], raw['sm2'], raw['tm2'], False)
    return m @ raw['wm3'] + raw['bm3']


if __name__ == "__main__":
    key = jax.random.PRNGKey(0)
    k_param, k_x = jax.random.split(key)
    raw = init_raw_params(k_param)
    w_slab = fuse_params(raw)                     # packed once; device-resident

    x = jax.random.normal(k_x, (BATCH, 6), jnp.float32)
    x_padded = pad_features(x)                    # one-time data prep, off the hot path

    fwd = jax.jit(gaze_model_forward)
    out_full = jax.block_until_ready(fwd(x_padded, w_slab))
    assert out_full.shape == (BATCH, LANES)

    pred = np.asarray(out_full)[:, :2]            # lanes 0..1 hold the prediction
    ref = np.asarray(reference_forward(x, raw))
    np.testing.assert_allclose(pred, ref, rtol=1e-4, atol=1e-4)

    print("KERNEL_OK")
</pallas_src>

<mosaic_0001>
module attributes {stable_mosaic.version = 11 : i64} {
  func.func @_gaze_kernel(%arg0: memref<128x128xf32, #tpu.memory_space<vmem>>, %arg1: memref<7x128x128xf32, #tpu.memory_space<vmem>>, %arg2: memref<128x128xf32, #tpu.memory_space<vmem>>) attributes {dimension_semantics = [], scalar_prefetch = 0 : i64, scratch_operands = 0 : i64, tpu.core_type = #tpu.core_type<tc>} {
    %c0 = arith.constant 0 : index
    %c0_0 = arith.constant 0 : index
    %0 = vector.load %arg0[%c0, %c0_0] : memref<128x128xf32, #tpu.memory_space<vmem>>, vector<128x128xf32>
    %c0_1 = arith.constant 0 : index
    %c0_2 = arith.constant 0 : index
    %c0_3 = arith.constant 0 : index
    %1 = vector.load %arg1[%c0_1, %c0_2, %c0_3] : memref<7x128x128xf32, #tpu.memory_space<vmem>>, vector<1x128x128xf32>
    %2 = vector.shape_cast %1 : vector<1x128x128xf32> to vector<128x128xf32>
    %c1 = arith.constant 1 : index
    %c0_4 = arith.constant 0 : index
    %c0_5 = arith.constant 0 : index
    %3 = vector.load %arg1[%c1, %c0_4, %c0_5] : memref<7x128x128xf32, #tpu.memory_space<vmem>>, vector<1x128x128xf32>
    %4 = vector.shape_cast %3 : vector<1x128x128xf32> to vector<128x128xf32>
    %c2 = arith.constant 2 : index
    %c0_6 = arith.constant 0 : index
    %c0_7 = arith.constant 0 : index
    %5 = vector.load %arg1[%c2, %c0_6, %c0_7] : memref<7x128x128xf32, #tpu.memory_space<vmem>>, vector<1x128x128xf32>
    %6 = vector.shape_cast %5 : vector<1x128x128xf32> to vector<128x128xf32>
    %c3 = arith.constant 3 : index
    %c0_8 = arith.constant 0 : index
    %c0_9 = arith.constant 0 : index
    %7 = vector.load %arg1[%c3, %c0_8, %c0_9] : memref<7x128x128xf32, #tpu.memory_space<vmem>>, vector<1x128x128xf32>
    %8 = vector.shape_cast %7 : vector<1x128x128xf32> to vector<128x128xf32>
    %c4 = arith.constant 4 : index
    %c0_10 = arith.constant 0 : index
    %c0_11 = arith.constant 0 : index
    %9 = vector.load %arg1[%c4, %c0_10, %c0_11] : memref<7x128x128xf32, #tpu.memory_space<vmem>>, vector<1x128x128xf32>
    %10 = vector.shape_cast %9 : vector<1x128x128xf32> to vector<128x128xf32>
    %c5 = arith.constant 5 : index
    %c0_12 = arith.constant 0 : index
    %c0_13 = arith.constant 0 : index
    %11 = vector.load %arg1[%c5, %c0_12, %c0_13] : memref<7x128x128xf32, #tpu.memory_space<vmem>>, vector<1x128x128xf32>
    %12 = vector.shape_cast %11 : vector<1x128x128xf32> to vector<128x128xf32>
    %c6_i32 = arith.constant 6 : i32
    %c0_i32 = arith.constant 0 : i32
    %c0_i32_14 = arith.constant 0 : i32
    %13 = tpu.memref_slice %arg1[%c6_i32, %c0_i32, %c0_i32_14] : memref<7x128x128xf32, #tpu.memory_space<vmem>> -> memref<1x128x128xf32, #tpu.memory_space<vmem>>
    %14 = tpu.memref_squeeze %13 : memref<1x128x128xf32, #tpu.memory_space<vmem>> -> memref<128x128xf32, #tpu.memory_space<vmem>>
    %c0_15 = arith.constant 0 : index
    %c0_16 = arith.constant 0 : index
    %15 = vector.load %14[%c0_15, %c0_16] : memref<128x128xf32, #tpu.memory_space<vmem>>, vector<1x128xf32>
    %c6_i32_17 = arith.constant 6 : i32
    %c0_i32_18 = arith.constant 0 : i32
    %c0_i32_19 = arith.constant 0 : i32
    %16 = tpu.memref_slice %arg1[%c6_i32_17, %c0_i32_18, %c0_i32_19] : memref<7x128x128xf32, #tpu.memory_space<vmem>> -> memref<1x128x128xf32, #tpu.memory_space<vmem>>
    %17 = tpu.memref_squeeze %16 : memref<1x128x128xf32, #tpu.memory_space<vmem>> -> memref<128x128xf32, #tpu.memory_space<vmem>>
    %c1_20 = arith.constant 1 : index
    %c0_21 = arith.constant 0 : index
    %18 = vector.load %17[%c1_20, %c0_21] : memref<128x128xf32, #tpu.memory_space<vmem>>, vector<1x128xf32>
    %c6_i32_22 = arith.constant 6 : i32
    %c0_i32_23 = arith.constant 0 : i32
    %c0_i32_24 = arith.constant 0 : i32
    %19 = tpu.memref_slice %arg1[%c6_i32_22, %c0_i32_23, %c0_i32_24] : memref<7x128x128xf32, #tpu.memory_space<vmem>> -> memref<1x128x128xf32, #tpu.memory_space<vmem>>
    %20 = tpu.memref_squeeze %19 : memref<1x128x128xf32, #tpu.memory_space<vmem>> -> memref<128x128xf32, #tpu.memory_space<vmem>>
    %c2_25 = arith.constant 2 : index
    %c0_26 = arith.constant 0 : index
    %21 = vector.load %20[%c2_25, %c0_26] : memref<128x128xf32, #tpu.memory_space<vmem>>, vector<1x128xf32>
    %c6_i32_27 = arith.constant 6 : i32
    %c0_i32_28 = arith.constant 0 : i32
    %c0_i32_29 = arith.constant 0 : i32
    %22 = tpu.memref_slice %arg1[%c6_i32_27, %c0_i32_28, %c0_i32_29] : memref<7x128x128xf32, #tpu.memory_space<vmem>> -> memref<1x128x128xf32, #tpu.memory_space<vmem>>
    %23 = tpu.memref_squeeze %22 : memref<1x128x128xf32, #tpu.memory_space<vmem>> -> memref<128x128xf32, #tpu.memory_space<vmem>>
    %c3_30 = arith.constant 3 : index
    %c0_31 = arith.constant 0 : index
    %24 = vector.load %23[%c3_30, %c0_31] : memref<128x128xf32, #tpu.memory_space<vmem>>, vector<1x128xf32>
    %c6_i32_32 = arith.constant 6 : i32
    %c0_i32_33 = arith.constant 0 : i32
    %c0_i32_34 = arith.constant 0 : i32
    %25 = tpu.memref_slice %arg1[%c6_i32_32, %c0_i32_33, %c0_i32_34] : memref<7x128x128xf32, #tpu.memory_space<vmem>> -> memref<1x128x128xf32, #tpu.memory_space<vmem>>
    %26 = tpu.memref_squeeze %25 : memref<1x128x128xf32, #tpu.memory_space<vmem>> -> memref<128x128xf32, #tpu.memory_space<vmem>>
    %c4_35 = arith.constant 4 : index
    %c0_36 = arith.constant 0 : index
    %27 = vector.load %26[%c4_35, %c0_36] : memref<128x128xf32, #tpu.memory_space<vmem>>, vector<1x128xf32>
    %c6_i32_37 = arith.constant 6 : i32
    %c0_i32_38 = arith.constant 0 : i32
    %c0_i32_39 = arith.constant 0 : i32
    %28 = tpu.memref_slice %arg1[%c6_i32_37, %c0_i32_38, %c0_i32_39] : memref<7x128x128xf32, #tpu.memory_space<vmem>> -> memref<1x128x128xf32, #tpu.memory_space<vmem>>
    %29 = tpu.memref_squeeze %28 : memref<1x128x128xf32, #tpu.memory_space<vmem>> -> memref<128x128xf32, #tpu.memory_space<vmem>>
    %c5_40 = arith.constant 5 : index
    %c0_41 = arith.constant 0 : index
    %30 = vector.load %29[%c5_40, %c0_41] : memref<128x128xf32, #tpu.memory_space<vmem>>, vector<1x128xf32>
    %c6_i32_42 = arith.constant 6 : i32
    %c0_i32_43 = arith.constant 0 : i32
    %c0_i32_44 = arith.constant 0 : i32
    %31 = tpu.memref_slice %arg1[%c6_i32_42, %c0_i32_43, %c0_i32_44] : memref<7x128x128xf32, #tpu.memory_space<vmem>> -> memref<1x128x128xf32, #tpu.memory_space<vmem>>
    %32 = tpu.memref_squeeze %31 : memref<1x128x128xf32, #tpu.memory_space<vmem>> -> memref<128x128xf32, #tpu.memory_space<vmem>>
    %c6 = arith.constant 6 : index
    %c0_45 = arith.constant 0 : index
    %33 = vector.load %32[%c6, %c0_45] : memref<128x128xf32, #tpu.memory_space<vmem>>, vector<1x128xf32>
    %c6_i32_46 = arith.constant 6 : i32
    %c0_i32_47 = arith.constant 0 : i32
    %c0_i32_48 = arith.constant 0 : i32
    %34 = tpu.memref_slice %arg1[%c6_i32_46, %c0_i32_47, %c0_i32_48] : memref<7x128x128xf32, #tpu.memory_space<vmem>> -> memref<1x128x128xf32, #tpu.memory_space<vmem>>
    %35 = tpu.memref_squeeze %34 : memref<1x128x128xf32, #tpu.memory_space<vmem>> -> memref<128x128xf32, #tpu.memory_space<vmem>>
    %c7 = arith.constant 7 : index
    %c0_49 = arith.constant 0 : index
    %36 = vector.load %35[%c7, %c0_49] : memref<128x128xf32, #tpu.memory_space<vmem>>, vector<1x128xf32>
    %c6_i32_50 = arith.constant 6 : i32
    %c0_i32_51 = arith.constant 0 : i32
    %c0_i32_52 = arith.constant 0 : i32
    %37 = tpu.memref_slice %arg1[%c6_i32_50, %c0_i32_51, %c0_i32_52] : memref<7x128x128xf32, #tpu.memory_space<vmem>> -> memref<1x128x128xf32, #tpu.memory_space<vmem>>
    %38 = tpu.memref_squeeze %37 : memref<1x128x128xf32, #tpu.memory_space<vmem>> -> memref<128x128xf32, #tpu.memory_space<vmem>>
    %c8 = arith.constant 8 : index
    %c0_53 = arith.constant 0 : index
    %39 = vector.load %38[%c8, %c0_53] : memref<128x128xf32, #tpu.memory_space<vmem>>, vector<1x128xf32>
    %cst = arith.constant dense<0.000000e+00> : vector<128x128xf32>
    %40 = tpu.matmul %0, %2, %cst {dimension_numbers = #tpu.dot_dimension_numbers<[1], [0], [0], [1], [0, 0, 1, 1], [], []>} : vector<128x128xf32>, vector<128x128xf32>, vector<128x128xf32> -> vector<128x128xf32>
    %41 = vector.broadcast %15 : vector<1x128xf32> to vector<128x128xf32>
    %42 = arith.addf %40, %41 : vector<128x128xf32>
    %cst_54 = arith.constant 0.000000e+00 : f32
    %43 = vector.broadcast %cst_54 : f32 to vector<128x128xf32>
    %44 = arith.maximumf %42, %43 : vector<128x128xf32>
    %45 = vector.broadcast %18 : vector<1x128xf32> to vector<128x128xf32>
    %46 = arith.mulf %44, %45 : vector<128x128xf32>
    %47 = vector.broadcast %21 : vector<1x128xf32> to vector<128x128xf32>
    %48 = arith.addf %46, %47 : vector<128x128xf32>
    %cst_55 = arith.constant dense<0.000000e+00> : vector<128x128xf32>
    %49 = tpu.matmul %48, %4, %cst_55 {dimension_numbers = #tpu.dot_dimension_numbers<[1], [0], [0], [1], [0, 0, 1, 1], [], []>} : vector<128x128xf32>, vector<128x128xf32>, vector<128x128xf32> -> vector<128x128xf32>
    %50 = vector.broadcast %24 : vector<1x128xf32> to vector<128x128xf32>
    %51 = arith.addf %49, %50 : vector<128x128xf32>
    %cst_56 = arith.constant 0.000000e+00 : f32
    %52 = vector.broadcast %cst_56 : f32 to vector<128x128xf32>
    %53 = arith.maximumf %51, %52 : vector<128x128xf32>
    %54 = vector.broadcast %27 : vector<1x128xf32> to vector<128x128xf32>
    %55 = arith.mulf %53, %54 : vector<128x128xf32>
    %56 = vector.broadcast %30 : vector<1x128xf32> to vector<128x128xf32>
    %57 = arith.addf %55, %56 : vector<128x128xf32>
    %58 = arith.addf %57, %48 : vector<128x128xf32>
    %cst_57 = arith.constant dense<0.000000e+00> : vector<128x128xf32>
    %59 = tpu.matmul %58, %8, %cst_57 {dimension_numbers = #tpu.dot_dimension_numbers<[1], [0], [0], [1], [0, 0, 1, 1], [], []>} : vector<128x128xf32>, vector<128x128xf32>, vector<128x128xf32> -> vector<128x128xf32>
    %cst_58 = arith.constant dense<0.000000e+00> : vector<128x128xf32>
    %60 = tpu.matmul %58, %6, %cst_58 {dimension_numbers = #tpu.dot_dimension_numbers<[1], [0], [0], [1], [0, 0, 1, 1], [], []>} : vector<128x128xf32>, vector<128x128xf32>, vector<128x128xf32> -> vector<128x128xf32>
    %61 = vector.broadcast %33 : vector<1x128xf32> to vector<128x128xf32>
    %62 = arith.addf %60, %61 : vector<128x128xf32>
    %cst_59 = arith.constant 0.000000e+00 : f32
    %63 = vector.broadcast %cst_59 : f32 to vector<128x128xf32>
    %64 = arith.maximumf %62, %63 : vector<128x128xf32>
    %cst_60 = arith.constant dense<0.000000e+00> : vector<128x128xf32>
    %65 = tpu.matmul %64, %10, %cst_60 {dimension_numbers = #tpu.dot_dimension_numbers<[1], [0], [0], [1], [0, 0, 1, 1], [], []>} : vector<128x128xf32>, vector<128x128xf32>, vector<128x128xf32> -> vector<128x128xf32>
    %66 = arith.addf %65, %59 : vector<128x128xf32>
    %67 = vector.broadcast %36 : vector<1x128xf32> to vector<128x128xf32>
    %68 = arith.addf %66, %67 : vector<128x128xf32>
    %cst_61 = arith.constant 0.000000e+00 : f32
    %69 = vector.broadcast %cst_61 : f32 to vector<128x128xf32>
    %70 = arith.maximumf %68, %69 : vector<128x128xf32>
    %cst_62 = arith.constant dense<0.000000e+00> : vector<128x128xf32>
    %71 = tpu.matmul %70, %12, %cst_62 {dimension_numbers = #tpu.dot_dimension_numbers<[1], [0], [0], [1], [0, 0, 1, 1], [], []>} : vector<128x128xf32>, vector<128x128xf32>, vector<128x128xf32> -> vector<128x128xf32>
    %72 = vector.broadcast %39 : vector<1x128xf32> to vector<128x128xf32>
    %73 = arith.addf %71, %72 : vector<128x128xf32>
    %c0_63 = arith.constant 0 : index
    %c0_64 = arith.constant 0 : index
    %74 = vector.load %arg2[%c0_63, %c0_64] : memref<128x128xf32, #tpu.memory_space<vmem>>, vector<128x128xf32>
    tpu.vector_store %arg2[%c0_63, %c0_64], %73 {strides = array<i32>} : memref<128x128xf32, #tpu.memory_space<vmem>>, vector<128x128xf32>,
    return
  }
}

</mosaic_0001>

<llo_original>
// kernel: gaze_model_forward.1
$region0: #{gaze_model_forward.1}
  #allocation0 [shape = 'u32[]', space=smem, size = 0x4, offset = 0x4, fixed_abs, tag = 'smem constant byte address 0x4 - core index']
  #allocation1 [shape = 'u32[72,128]{1,0:T(1,128)}', space=vmem, size = 0x9000, scoped, tag = 'internal scratch']
  %s0 = inlined_call_operand.hbm [shape: f32[128,128], index: 0, kind: input, shape index: {}]
  %s1 = inlined_call_operand.hbm [shape: f32[7,128,128], index: 1, kind: input, shape index: {}]
  %s2 = inlined_call_operand.hbm [shape: f32[128,128], index: 2, kind: output, shape index: {}]
  %s3 = sld [smem:[#allocation0]]
  $region26: #{gaze_model_forward.1} parent=0
    _
  %s5 = ssub.s32 1, %s3
  %s6 = scalar_select 0, %s5, %s3
  $region1: #{gaze_model_forward.1} parent=0
    #allocation2 [shape = 'u8[65536]{0}', space=vmem, size = 0x10000, scoped, tag = 'input window, operand 0, single buffered']
    #allocation3 [shape = 's32[1]{0}', space=sflag, size = 0x4, scoped, tag = 'scoped memory for gaze_model_forward.1']
    #allocation4 [shape = 's32[1]{0}', space=sflag, size = 0x4, scoped, tag = 'scoped memory for gaze_model_forward.1']
    #allocation5 [shape = 'u8[458752]{0}', space=vmem, size = 0x70000, scoped, tag = 'input window, operand 1, single buffered']
    #allocation6 [shape = 's32[1]{0}', space=sflag, size = 0x4, scoped, tag = 'scoped memory for gaze_model_forward.1']
    #allocation7 [shape = 'u8[65536]{0}', space=vmem, size = 0x10000, scoped, tag = 'output window, operand 0, single buffered']
    %7 = vsyncpa [#allocation3], 0
    %8 = vsyncpa [#allocation6], 0
    %9 = vsyncpa [#allocation4], 0
    // Predicated region
    $region2: #{gaze_model_forward.1} parent=1 // pred_check
      _
    $region3: #{gaze_model_forward.1} parent=1 // pred_check_branch
      %11 = sbr.rel (0) target = $region5
    $region4: #{gaze_model_forward.1} parent=1 // pred_region
      %13 = vsyncadd [#allocation3], 0
      %s14 = sshll.u32 %s0, 4
      %s15 = int_to_ptr.hbm [resolvable:$true] %s14
      %s16 = sshll.u32 [#allocation2], 4
      %s17 = int_to_ptr.vmem [resolvable:$true] %s16
      %22 = dma.hbm_to_vmem [thread:$0]  %s15, 2048, %s17, [#allocation3], 128, 128, 8
    $region5: #{gaze_model_forward.1} parent=1 // pred_fallthru
      _
    // Predicated region
    $region6: #{gaze_model_forward.1} parent=1 // pred_check
      _
    $region7: #{gaze_model_forward.1} parent=1 // pred_check_branch
      %24 = sbr.rel (0) target = $region9
    $region8: #{gaze_model_forward.1} parent=1 // pred_region
      %26 = vsyncadd [#allocation6], 0
      %s27 = sshll.u32 %s1, 4
      %s28 = int_to_ptr.hbm [resolvable:$true] %s27
      %s29 = sshll.u32 [#allocation5], 4
      %s30 = int_to_ptr.vmem [resolvable:$true] %s29
      %35 = dma.hbm_to_vmem [thread:$0]  %s28, 14336, %s30, [#allocation6], 128, 128, 8
    $region9: #{gaze_model_forward.1} parent=1 // pred_fallthru
      _
    // Predicated region
    $region10: #{gaze_model_forward.1} parent=1 // pred_check
      _
    $region11: #{gaze_model_forward.1} parent=1 // pred_check_branch
      %37 = sbr.rel (0) target = $region13
    $region12: #{gaze_model_forward.1} parent=1 // pred_region
      %39 = dma.done [#allocation3], 2048
    $region13: #{gaze_model_forward.1} parent=1 // pred_fallthru
      _
    // Predicated region
    $region14: #{gaze_model_forward.1} parent=1 // pred_check
      _
    $region15: #{gaze_model_forward.1} parent=1 // pred_check_branch
      %41 = sbr.rel (0) target = $region17
    $region16: #{gaze_model_forward.1} parent=1 // pred_region
      %43 = dma.done [#allocation6], 14336
    $region17: #{gaze_model_forward.1} parent=1 // pred_fallthru
      _
    %v44 = vld [vmem:[#allocation2] sm:$0xff]
    %v45 = vld [vmem:[#allocation2 + $0x8] sm:$0xff]
    %v46 = vld [vmem:[#allocation2 + $0x10] sm:$0xff]
    %v47 = vld [vmem:[#allocation2 + $0x18] sm:$0xff]
    %v48 = vld [vmem:[#allocation2 + $0x20] sm:$0xff]
    %v49 = vld [vmem:[#allocation2 + $0x28] sm:$0xff]
    %v50 = vld [vmem:[#allocation2 + $0x30] sm:$0xff]
    %v51 = vld [vmem:[#allocation2 + $0x38] sm:$0xff]
    %v52 = vld [vmem:[#allocation2 + $0x40] sm:$0xff]
    %v53 = vld [vmem:[#allocation2 + $0x48] sm:$0xff]
    %v54 = vld [vmem:[#allocation2 + $0x50] sm:$0xff]
    %v55 = vld [vmem:[#allocation2 + $0x58] sm:$0xff]
    %v56 = vld [vmem:[#allocation2 + $0x60] sm:$0xff]
    %v57 = vld [vmem:[#allocation2 + $0x68] sm:$0xff]
    %v58 = vld [vmem:[#allocation2 + $0x70] sm:$0xff]
    %v59 = vld [vmem:[#allocation2 + $0x78] sm:$0xff]
    %v60 = vld [vmem:[#allocation5] sm:$0xff]
    %v61 = vld [vmem:[#allocation5 + $0x8] sm:$0xff]
    %v62 = vld [vmem:[#allocation5 + $0x10] sm:$0xff]
    %v63 = vld [vmem:[#allocation5 + $0x18] sm:$0xff]
    %v64 = vld [vmem:[#allocation5 + $0x20] sm:$0xff]
    %v65 = vld [vmem:[#allocation5 + $0x28] sm:$0xff]
    %v66 = vld [vmem:[#allocation5 + $0x30] sm:$0xff]
    %v67 = vld [vmem:[#allocation5 + $0x38] sm:$0xff]
    %v68 = vld [vmem:[#allocation5 + $0x40] sm:$0xff]
    %v69 = vld [vmem:[#allocation5 + $0x48] sm:$0xff]
    %v70 = vld [vmem:[#allocation5 + $0x50] sm:$0xff]
    %v71 = vld [vmem:[#allocation5 + $0x58] sm:$0xff]
    %v72 = vld [vmem:[#allocation5 + $0x60] sm:$0xff]
    %v73 = vld [vmem:[#allocation5 + $0x68] sm:$0xff]
    %v74 = vld [vmem:[#allocation5 + $0x70] sm:$0xff]
    %v75 = vld [vmem:[#allocation5 + $0x78] sm:$0xff]
    %s76 = scalar_lea.vmem [#allocation5], 128
    %v77 = vld [vmem:[%s76] sm:$0xff]
    %v78 = vld [vmem:[%s76 + $0x8] sm:$0xff]
    %v79 = vld [vmem:[%s76 + $0x10] sm:$0xff]
    %v80 = vld [vmem:[%s76 + $0x18] sm:$0xff]
    %v81 = vld [vmem:[%s76 + $0x20] sm:$0xff]
    %v82 = vld [vmem:[%s76 + $0x28] sm:$0xff]
    %v83 = vld [vmem:[%s76 + $0x30] sm:$0xff]
    %v84 = vld [vmem:[%s76 + $0x38] sm:$0xff]
    %v85 = vld [vmem:[%s76 + $0x40] sm:$0xff]
    %v86 = vld [vmem:[%s76 + $0x48] sm:$0xff]
    %v87 = vld [vmem:[%s76 + $0x50] sm:$0xff]
    %v88 = vld [vmem:[%s76 + $0x58] sm:$0xff]
    %v89 = vld [vmem:[%s76 + $0x60] sm:$0xff]
    %v90 = vld [vmem:[%s76 + $0x68] sm:$0xff]
    %v91 = vld [vmem:[%s76 + $0x70] sm:$0xff]
    %v92 = vld [vmem:[%s76 + $0x78] sm:$0xff]
    %s93 = scalar_lea.vmem [#allocation5], 256
    %v94 = vld [vmem:[%s93] sm:$0xff]
    %v95 = vld [vmem:[%s93 + $0x8] sm:$0xff]
    %v96 = vld [vmem:[%s93 + $0x10] sm:$0xff]
    %v97 = vld [vmem:[%s93 + $0x18] sm:$0xff]
    %v98 = vld [vmem:[%s93 + $0x20] sm:$0xff]
    %v99 = vld [vmem:[%s93 + $0x28] sm:$0xff]
    %v100 = vld [vmem:[%s93 + $0x30] sm:$0xff]
    %v101 = vld [vmem:[%s93 + $0x38] sm:$0xff]
    %v102 = vld [vmem:[%s93 + $0x40] sm:$0xff]
    %v103 = vld [vmem:[%s93 + $0x48] sm:$0xff]
    %v104 = vld [vmem:[%s93 + $0x50] sm:$0xff]
    %v105 = vld [vmem:[%s93 + $0x58] sm:$0xff]
    %v106 = vld [vmem:[%s93 + $0x60] sm:$0xff]
    %v107 = vld [vmem:[%s93 + $0x68] sm:$0xff]
    %v108 = vld [vmem:[%s93 + $0x70] sm:$0xff]
    %v109 = vld [vmem:[%s93 + $0x78] sm:$0xff]
    %s110 = scalar_lea.vmem [#allocation5], 384
    %v111 = vld [vmem:[%s110] sm:$0xff]
    %v112 = vld [vmem:[%s110 + $0x8] sm:$0xff]
    %v113 = vld [vmem:[%s110 + $0x10] sm:$0xff]
    %v114 = vld [vmem:[%s110 + $0x18] sm:$0xff]
    %v115 = vld [vmem:[%s110 + $0x20] sm:$0xff]
    %v116 = vld [vmem:[%s110 + $0x28] sm:$0xff]
    %v117 = vld [vmem:[%s110 + $0x30] sm:$0xff]
    %v118 = vld [vmem:[%s110 + $0x38] sm:$0xff]
    %v119 = vld [vmem:[%s110 + $0x40] sm:$0xff]
    %v120 = vld [vmem:[%s110 + $0x48] sm:$0xff]
    %v121 = vld [vmem:[%s110 + $0x50] sm:$0xff]
    %v122 = vld [vmem:[%s110 + $0x58] sm:$0xff]
    %v123 = vld [vmem:[%s110 + $0x60] sm:$0xff]
    %v124 = vld [vmem:[%s110 + $0x68] sm:$0xff]
    %v125 = vld [vmem:[%s110 + $0x70] sm:$0xff]
    %v126 = vld [vmem:[%s110 + $0x78] sm:$0xff]
    %s127 = scalar_lea.vmem [#allocation5], 512
    %v128 = vld [vmem:[%s127] sm:$0xff]
    %v129 = vld [vmem:[%s127 + $0x8] sm:$0xff]
    %v130 = vld [vmem:[%s127 + $0x10] sm:$0xff]
    %v131 = vld [vmem:[%s127 + $0x18] sm:$0xff]
    %v132 = vld [vmem:[%s127 + $0x20] sm:$0xff]
    %v133 = vld [vmem:[%s127 + $0x28] sm:$0xff]
    %v134 = vld [vmem:[%s127 + $0x30] sm:$0xff]
    %v135 = vld [vmem:[%s127 + $0x38] sm:$0xff]
    %v136 = vld [vmem:[%s127 + $0x40] sm:$0xff]
    %v137 = vld [vmem:[%s127 + $0x48] sm:$0xff]
    %v138 = vld [vmem:[%s127 + $0x50] sm:$0xff]
    %v139 = vld [vmem:[%s127 + $0x58] sm:$0xff]
    %v140 = vld [vmem:[%s127 + $0x60] sm:$0xff]
    %v141 = vld [vmem:[%s127 + $0x68] sm:$0xff]
    %v142 = vld [vmem:[%s127 + $0x70] sm:$0xff]
    %v143 = vld [vmem:[%s127 + $0x78] sm:$0xff]
    %s144 = scalar_lea.vmem [#allocation5], 640
    %v145 = vld [vmem:[%s144] sm:$0xff]
    %v146 = vld [vmem:[%s144 + $0x8] sm:$0xff]
    %v147 = vld [vmem:[%s144 + $0x10] sm:$0xff]
    %v148 = vld [vmem:[%s144 + $0x18] sm:$0xff]
    %v149 = vld [vmem:[%s144 + $0x20] sm:$0xff]
    %v150 = vld [vmem:[%s144 + $0x28] sm:$0xff]
    %v151 = vld [vmem:[%s144 + $0x30] sm:$0xff]
    %v152 = vld [vmem:[%s144 + $0x38] sm:$0xff]
    %v153 = vld [vmem:[%s144 + $0x40] sm:$0xff]
    %v154 = vld [vmem:[%s144 + $0x48] sm:$0xff]
    %v155 = vld [vmem:[%s144 + $0x50] sm:$0xff]
    %v156 = vld [vmem:[%s144 + $0x58] sm:$0xff]
    %v157 = vld [vmem:[%s144 + $0x60] sm:$0xff]
    %v158 = vld [vmem:[%s144 + $0x68] sm:$0xff]
    %v159 = vld [vmem:[%s144 + $0x70] sm:$0xff]
    %v160 = vld [vmem:[%s144 + $0x78] sm:$0xff]
    %s161 = scalar_lea.vmem [#allocation5], 768
    %v162 = vld [vmem:[%s161] sm:$0x1]
    %v163 = vld [vmem:[%s161 + $0x1] sm:$0x1]
    %v164 = vld [vmem:[%s161 + $0x2] sm:$0x1]
    %v165 = vld [vmem:[%s161 + $0x3] sm:$0x1]
    %v166 = vld [vmem:[%s161 + $0x4] sm:$0x1]
    %v167 = vld [vmem:[%s161 + $0x5] sm:$0x1]
    %v168 = vld [vmem:[%s161 + $0x6] sm:$0x1]
    %v169 = vld [vmem:[%s161 + $0x7] sm:$0x1]
    %v170 = vld [vmem:[%s161 + $0x8] sm:$0x1]
    %v171 = vperm.slane %v162, 0
    %172 = vmatpush.msra.mxu0 %v75
    %173 = vmatpush.msra.mxu0 %v74
    %174 = vmatpush.msra.mxu0 %v73
    %175 = vmatpush.msra.mxu0 %v72
    %176 = vmatpush.msra.mxu0 %v71
    %177 = vmatpush.msra.mxu0 %v70
    %178 = vmatpush.msra.mxu0 %v69
    %179 = vmatpush.msra.mxu0 %v68
    %180 = vmatpush.msra.mxu0 %v67
    %181 = vmatpush.msra.mxu0 %v66
    %182 = vmatpush.msra.mxu0 %v65
    %183 = vmatpush.msra.mxu0 %v64
    %184 = vmatpush.msra.mxu0 %v63
    %185 = vmatpush.msra.mxu0 %v62
    %186 = vmatpush.msra.mxu0 %v61
    %187 = vmatpush.msra.mxu0 %v60
    %188 = vmatmul.f32.gmra.mxu0 %v44
    %v189 = vpop.f32.mrf.mxu0
    %v190 = vadd.f32 %v171, %v189
    %191 = vmatmul.f32.gmra.mxu0 %v45
    %v192 = vpop.f32.mrf.mxu0
    %v193 = vadd.f32 %v171, %v192
    %194 = vmatmul.f32.gmra.mxu0 %v46
    %v195 = vpop.f32.mrf.mxu0
    %v196 = vadd.f32 %v171, %v195
    %197 = vmatmul.f32.gmra.mxu0 %v47
    %v198 = vpop.f32.mrf.mxu0
    %v199 = vadd.f32 %v171, %v198
    %200 = vmatmul.f32.gmra.mxu0 %v48
    %v201 = vpop.f32.mrf.mxu0
    %v202 = vadd.f32 %v171, %v201
    %203 = vmatmul.f32.gmra.mxu0 %v49
    %v204 = vpop.f32.mrf.mxu0
    %v205 = vadd.f32 %v171, %v204
    %206 = vmatmul.f32.gmra.mxu0 %v50
    %v207 = vpop.f32.mrf.mxu0
    %v208 = vadd.f32 %v171, %v207
    %209 = vmatmul.f32.gmra.mxu0 %v51
    %v210 = vpop.f32.mrf.mxu0
    %v211 = vadd.f32 %v171, %v210
    %212 = vmatmul.f32.gmra.mxu0 %v52
    %v213 = vpop.f32.mrf.mxu0
    %v214 = vadd.f32 %v171, %v213
    %215 = vmatmul.f32.gmra.mxu0 %v53
    %v216 = vpop.f32.mrf.mxu0
    %v217 = vadd.f32 %v171, %v216
    %218 = vmatmul.f32.gmra.mxu0 %v54
    %v219 = vpop.f32.mrf.mxu0
    %v220 = vadd.f32 %v171, %v219
    %221 = vmatmul.f32.gmra.mxu0 %v55
    %v222 = vpop.f32.mrf.mxu0
    %v223 = vadd.f32 %v171, %v222
    %224 = vmatmul.f32.gmra.mxu0 %v56
    %v225 = vpop.f32.mrf.mxu0
    %v226 = vadd.f32 %v171, %v225
    %227 = vmatmul.f32.gmra.mxu0 %v57
    %v228 = vpop.f32.mrf.mxu0
    %v229 = vadd.f32 %v171, %v228
    %230 = vmatmul.f32.gmra.mxu0 %v58
    %v231 = vpop.f32.mrf.mxu0
    %v232 = vadd.f32 %v171, %v231
    %233 = vmatmul.f32.gmra.mxu0 %v59
    %v234 = vpop.f32.mrf.mxu0
    %v235 = vadd.f32 %v171, %v234
    %236 = vdwg.mxu0
    %v237 = vmax.f32 %v190, 0.0
    %v238 = vmax.f32 %v193, 0.0
    %v239 = vmax.f32 %v196, 0.0
    %v240 = vmax.f32 %v199, 0.0
    %v241 = vmax.f32 %v202, 0.0
    %v242 = vmax.f32 %v205, 0.0
    %v243 = vmax.f32 %v208, 0.0
    %v244 = vmax.f32 %v211, 0.0
    %v245 = vmax.f32 %v214, 0.0
    %v246 = vmax.f32 %v217, 0.0
    %v247 = vmax.f32 %v220, 0.0
    %v248 = vmax.f32 %v223, 0.0
    %v249 = vmax.f32 %v226, 0.0
    %v250 = vmax.f32 %v229, 0.0
    %v251 = vmax.f32 %v232, 0.0
    %v252 = vmax.f32 %v235, 0.0
    %v253 = vperm.slane %v163, 0
    %v254 = vmul.f32 %v237, %v253
    %v255 = vmul.f32 %v238, %v253
    %v256 = vmul.f32 %v239, %v253
    %v257 = vmul.f32 %v240, %v253
    %v258 = vmul.f32 %v241, %v253
    %v259 = vmul.f32 %v242, %v253
    %v260 = vmul.f32 %v243, %v253
    %v261 = vmul.f32 %v244, %v253
    %v262 = vmul.f32 %v245, %v253
    %v263 = vmul.f32 %v246, %v253
    %v264 = vmul.f32 %v247, %v253
    %v265 = vmul.f32 %v248, %v253
    %v266 = vmul.f32 %v249, %v253
    %v267 = vmul.f32 %v250, %v253
    %v268 = vmul.f32 %v251, %v253
    %v269 = vmul.f32 %v252, %v253
    %v270 = vperm.slane %v164, 0
    %v271 = vadd.f32 %v254, %v270
    %v272 = vadd.f32 %v255, %v270
    %v273 = vadd.f32 %v256, %v270
    %v274 = vadd.f32 %v257, %v270
    %v275 = vadd.f32 %v258, %v270
    %v276 = vadd.f32 %v259, %v270
    %v277 = vadd.f32 %v260, %v270
    %v278 = vadd.f32 %v261, %v270
    %v279 = vadd.f32 %v262, %v270
    %v280 = vadd.f32 %v263, %v270
    %v281 = vadd.f32 %v264, %v270
    %v282 = vadd.f32 %v265, %v270
    %v283 = vadd.f32 %v266, %v270
    %v284 = vadd.f32 %v267, %v270
    %v285 = vadd.f32 %v268, %v270
    %v286 = vadd.f32 %v269, %v270
    %v287 = vperm.slane %v165, 0
    %288 = vmatpush.msra.mxu0 %v92
    %289 = vmatpush.msra.mxu0 %v91
    %290 = vmatpush.msra.mxu0 %v90
    %291 = vmatpush.msra.mxu0 %v89
    %292 = vmatpush.msra.mxu0 %v88
    %293 = vmatpush.msra.mxu0 %v87
    %294 = vmatpush.msra.mxu0 %v86
    %295 = vmatpush.msra.mxu0 %v85
    %296 = vmatpush.msra.mxu0 %v84
    %297 = vmatpush.msra.mxu0 %v83
    %298 = vmatpush.msra.mxu0 %v82
    %299 = vmatpush.msra.mxu0 %v81
    %300 = vmatpush.msra.mxu0 %v80
    %301 = vmatpush.msra.mxu0 %v79
    %302 = vmatpush.msra.mxu0 %v78
    %303 = vmatpush.msra.mxu0 %v77
    %304 = vmatmul.f32.gmra.mxu0 %v271
    %v305 = vpop.f32.mrf.mxu0
    %v306 = vadd.f32 %v287, %v305
    %307 = vmatmul.f32.gmra.mxu0 %v272
    %v308 = vpop.f32.mrf.mxu0
    %v309 = vadd.f32 %v287, %v308
    %310 = vmatmul.f32.gmra.mxu0 %v273
    %v311 = vpop.f32.mrf.mxu0
    %v312 = vadd.f32 %v287, %v311
    %313 = vmatmul.f32.gmra.mxu0 %v274
    %v314 = vpop.f32.mrf.mxu0
    %v315 = vadd.f32 %v287, %v314
    %316 = vmatmul.f32.gmra.mxu0 %v275
    %v317 = vpop.f32.mrf.mxu0
    %v318 = vadd.f32 %v287, %v317
    %319 = vmatmul.f32.gmra.mxu0 %v276
    %v320 = vpop.f32.mrf.mxu0
    %v321 = vadd.f32 %v287, %v320
    %322 = vmatmul.f32.gmra.mxu0 %v277
    %v323 = vpop.f32.mrf.mxu0
    %v324 = vadd.f32 %v287, %v323
    %325 = vmatmul.f32.gmra.mxu0 %v278
    %v326 = vpop.f32.mrf.mxu0
    %v327 = vadd.f32 %v287, %v326
    %328 = vmatmul.f32.gmra.mxu0 %v279
    %v329 = vpop.f32.mrf.mxu0
    %v330 = vadd.f32 %v287, %v329
    %331 = vmatmul.f32.gmra.mxu0 %v280
    %v332 = vpop.f32.mrf.mxu0
    %v333 = vadd.f32 %v287, %v332
    %334 = vmatmul.f32.gmra.mxu0 %v281
    %v335 = vpop.f32.mrf.mxu0
    %v336 = vadd.f32 %v287, %v335
    %337 = vmatmul.f32.gmra.mxu0 %v282
    %v338 = vpop.f32.mrf.mxu0
    %v339 = vadd.f32 %v287, %v338
    %340 = vmatmul.f32.gmra.mxu0 %v283
    %v341 = vpop.f32.mrf.mxu0
    %v342 = vadd.f32 %v287, %v341
    %343 = vmatmul.f32.gmra.mxu0 %v284
    %v344 = vpop.f32.mrf.mxu0
    %v345 = vadd.f32 %v287, %v344
    %346 = vmatmul.f32.gmra.mxu0 %v285
    %v347 = vpop.f32.mrf.mxu0
    %v348 = vadd.f32 %v287, %v347
    %349 = vmatmul.f32.gmra.mxu0 %v286
    %v350 = vpop.f32.mrf.mxu0
    %v351 = vadd.f32 %v287, %v350
    %352 = vdwg.mxu0
    %v353 = vmax.f32 %v306, 0.0
    %v354 = vmax.f32 %v309, 0.0
    %v355 = vmax.f32 %v312, 0.0
    %v356 = vmax.f32 %v315, 0.0
    %v357 = vmax.f32 %v318, 0.0
    %v358 = vmax.f32 %v321, 0.0
    %v359 = vmax.f32 %v324, 0.0
    %v360 = vmax.f32 %v327, 0.0
    %v361 = vmax.f32 %v330, 0.0
    %v362 = vmax.f32 %v333, 0.0
    %v363 = vmax.f32 %v336, 0.0
    %v364 = vmax.f32 %v339, 0.0
    %v365 = vmax.f32 %v342, 0.0
    %v366 = vmax.f32 %v345, 0.0
    %v367 = vmax.f32 %v348, 0.0
    %v368 = vmax.f32 %v351, 0.0
    %v369 = vperm.slane %v166, 0
    %v370 = vmul.f32 %v353, %v369
    %v371 = vmul.f32 %v354, %v369
    %v372 = vmul.f32 %v355, %v369
    %v373 = vmul.f32 %v356, %v369
    %v374 = vmul.f32 %v357, %v369
    %v375 = vmul.f32 %v358, %v369
    %v376 = vmul.f32 %v359, %v369
    %v377 = vmul.f32 %v360, %v369
    %v378 = vmul.f32 %v361, %v369
    %v379 = vmul.f32 %v362, %v369
    %v380 = vmul.f32 %v363, %v369
    %v381 = vmul.f32 %v364, %v369
    %v382 = vmul.f32 %v365, %v369
    %v383 = vmul.f32 %v366, %v369
    %v384 = vmul.f32 %v367, %v369
    %v385 = vmul.f32 %v368, %v369
    %v386 = vperm.slane %v167, 0
    %v387 = vadd.f32 %v370, %v386
    %v388 = vadd.f32 %v371, %v386
    %v389 = vadd.f32 %v372, %v386
    %v390 = vadd.f32 %v373, %v386
    %v391 = vadd.f32 %v374, %v386
    %v392 = vadd.f32 %v375, %v386
    %v393 = vadd.f32 %v376, %v386
    %v394 = vadd.f32 %v377, %v386
    %v395 = vadd.f32 %v378, %v386
    %v396 = vadd.f32 %v379, %v386
    %v397 = vadd.f32 %v380, %v386
    %v398 = vadd.f32 %v381, %v386
    %v399 = vadd.f32 %v382, %v386
    %v400 = vadd.f32 %v383, %v386
    %v401 = vadd.f32 %v384, %v386
    %v402 = vadd.f32 %v385, %v386
    %v403 = vadd.f32 %v387, %v271
    %v404 = vadd.f32 %v388, %v272
    %v405 = vadd.f32 %v389, %v273
    %v406 = vadd.f32 %v390, %v274
    %v407 = vadd.f32 %v391, %v275
    %v408 = vadd.f32 %v392, %v276
    %v409 = vadd.f32 %v393, %v277
    %v410 = vadd.f32 %v394, %v278
    %v411 = vadd.f32 %v395, %v279
    %v412 = vadd.f32 %v396, %v280
    %v413 = vadd.f32 %v397, %v281
    %v414 = vadd.f32 %v398, %v282
    %v415 = vadd.f32 %v399, %v283
    %v416 = vadd.f32 %v400, %v284
    %v417 = vadd.f32 %v401, %v285
    %v418 = vadd.f32 %v402, %v286
    %419 = vmatpush.msra.mxu0 %v126
    %420 = vmatpush.msra.mxu0 %v125
    %421 = vmatpush.msra.mxu0 %v124
    %422 = vmatpush.msra.mxu0 %v123
    %423 = vmatpush.msra.mxu0 %v122
    %424 = vmatpush.msra.mxu0 %v121
    %425 = vmatpush.msra.mxu0 %v120
    %426 = vmatpush.msra.mxu0 %v119
    %427 = vmatpush.msra.mxu0 %v118
    %428 = vmatpush.msra.mxu0 %v117
    %429 = vmatpush.msra.mxu0 %v116
    %430 = vmatpush.msra.mxu0 %v115
    %431 = vmatpush.msra.mxu0 %v114
    %432 = vmatpush.msra.mxu0 %v113
    %433 = vmatpush.msra.mxu0 %v112
    %434 = vmatpush.msra.mxu0 %v111
    %435 = vmatmul.f32.gmra.mxu0 %v403
    %v436 = vpop.f32.mrf.mxu0
    %v437 = vadd.f32 0.0, %v436
    %438 = vmatmul.f32.gmra.mxu0 %v404
    %v439 = vpop.f32.mrf.mxu0
    %v440 = vadd.f32 0.0, %v439
    %441 = vmatmul.f32.gmra.mxu0 %v405
    %v442 = vpop.f32.mrf.mxu0
    %v443 = vadd.f32 0.0, %v442
    %444 = vmatmul.f32.gmra.mxu0 %v406
    %v445 = vpop.f32.mrf.mxu0
    %v446 = vadd.f32 0.0, %v445
    %447 = vmatmul.f32.gmra.mxu0 %v407
    %v448 = vpop.f32.mrf.mxu0
    %v449 = vadd.f32 0.0, %v448
    %450 = vmatmul.f32.gmra.mxu0 %v408
    %v451 = vpop.f32.mrf.mxu0
    %v452 = vadd.f32 0.0, %v451
    %453 = vmatmul.f32.gmra.mxu0 %v409
    %v454 = vpop.f32.mrf.mxu0
    %v455 = vadd.f32 0.0, %v454
    %456 = vmatmul.f32.gmra.mxu0 %v410
    %v457 = vpop.f32.mrf.mxu0
    %v458 = vadd.f32 0.0, %v457
    %459 = vmatmul.f32.gmra.mxu0 %v411
    %v460 = vpop.f32.mrf.mxu0
    %v461 = vadd.f32 0.0, %v460
    %462 = vmatmul.f32.gmra.mxu0 %v412
    %v463 = vpop.f32.mrf.mxu0
    %v464 = vadd.f32 0.0, %v463
    %465 = vmatmul.f32.gmra.mxu0 %v413
    %v466 = vpop.f32.mrf.mxu0
    %v467 = vadd.f32 0.0, %v466
    %468 = vmatmul.f32.gmra.mxu0 %v414
    %v469 = vpop.f32.mrf.mxu0
    %v470 = vadd.f32 0.0, %v469
    %471 = vmatmul.f32.gmra.mxu0 %v415
    %v472 = vpop.f32.mrf.mxu0
    %v473 = vadd.f32 0.0, %v472
    %474 = vmatmul.f32.gmra.mxu0 %v416
    %v475 = vpop.f32.mrf.mxu0
    %v476 = vadd.f32 0.0, %v475
    %477 = vmatmul.f32.gmra.mxu0 %v417
    %v478 = vpop.f32.mrf.mxu0
    %v479 = vadd.f32 0.0, %v478
    %480 = vmatmul.f32.gmra.mxu0 %v418
    %v481 = vpop.f32.mrf.mxu0
    %v482 = vadd.f32 0.0, %v481
    %483 = vdwg.mxu0
    %v484 = vperm.slane %v168, 0
    %485 = vmatpush.msra.mxu0 %v109
    %486 = vmatpush.msra.mxu0 %v108
    %487 = vmatpush.msra.mxu0 %v107
    %488 = vmatpush.msra.mxu0 %v106
    %489 = vmatpush.msra.mxu0 %v105
    %490 = vmatpush.msra.mxu0 %v104
    %491 = vmatpush.msra.mxu0 %v103
    %492 = vmatpush.msra.mxu0 %v102
    %493 = vmatpush.msra.mxu0 %v101
    %494 = vmatpush.msra.mxu0 %v100
    %495 = vmatpush.msra.mxu0 %v99
    %496 = vmatpush.msra.mxu0 %v98
    %497 = vmatpush.msra.mxu0 %v97
    %498 = vmatpush.msra.mxu0 %v96
    %499 = vmatpush.msra.mxu0 %v95
    %500 = vmatpush.msra.mxu0 %v94
    %501 = vmatmul.f32.gmra.mxu0 %v403
    %v502 = vpop.f32.mrf.mxu0
    %v503 = vadd.f32 %v484, %v502
    %504 = vmatmul.f32.gmra.mxu0 %v404
    %v505 = vpop.f32.mrf.mxu0
    %v506 = vadd.f32 %v484, %v505
    %507 = vmatmul.f32.gmra.mxu0 %v405
    %v508 = vpop.f32.mrf.mxu0
    %v509 = vadd.f32 %v484, %v508
    %510 = vmatmul.f32.gmra.mxu0 %v406
    %v511 = vpop.f32.mrf.mxu0
    %v512 = vadd.f32 %v484, %v511
    %513 = vmatmul.f32.gmra.mxu0 %v407
    %v514 = vpop.f32.mrf.mxu0
    %v515 = vadd.f32 %v484, %v514
    %516 = vmatmul.f32.gmra.mxu0 %v408
    %v517 = vpop.f32.mrf.mxu0
    %v518 = vadd.f32 %v484, %v517
    %519 = vmatmul.f32.gmra.mxu0 %v409
    %v520 = vpop.f32.mrf.mxu0
    %v521 = vadd.f32 %v484, %v520
    %522 = vmatmul.f32.gmra.mxu0 %v410
    %v523 = vpop.f32.mrf.mxu0
    %v524 = vadd.f32 %v484, %v523
    %525 = vmatmul.f32.gmra.mxu0 %v411
    %v526 = vpop.f32.mrf.mxu0
    %v527 = vadd.f32 %v484, %v526
    %528 = vmatmul.f32.gmra.mxu0 %v412
    %v529 = vpop.f32.mrf.mxu0
    %v530 = vadd.f32 %v484, %v529
    %531 = vmatmul.f32.gmra.mxu0 %v413
    %v532 = vpop.f32.mrf.mxu0
    %v533 = vadd.f32 %v484, %v532
    %534 = vmatmul.f32.gmra.mxu0 %v414
    %v535 = vpop.f32.mrf.mxu0
    %v536 = vadd.f32 %v484, %v535
    %537 = vmatmul.f32.gmra.mxu0 %v415
    %v538 = vpop.f32.mrf.mxu0
    %v539 = vadd.f32 %v484, %v538
    %540 = vmatmul.f32.gmra.mxu0 %v416
    %v541 = vpop.f32.mrf.mxu0
    %v542 = vadd.f32 %v484, %v541
    %543 = vmatmul.f32.gmra.mxu0 %v417
    %v544 = vpop.f32.mrf.mxu0
    %v545 = vadd.f32 %v484, %v544
    %546 = vmatmul.f32.gmra.mxu0 %v418
    %v547 = vpop.f32.mrf.mxu0
    %v548 = vadd.f32 %v484, %v547
    %549 = vdwg.mxu0
    %v550 = vmax.f32 %v503, 0.0
    %v551 = vmax.f32 %v506, 0.0
    %v552 = vmax.f32 %v509, 0.0
    %v553 = vmax.f32 %v512, 0.0
    %v554 = vmax.f32 %v515, 0.0
    %v555 = vmax.f32 %v518, 0.0
    %v556 = vmax.f32 %v521, 0.0
    %v557 = vmax.f32 %v524, 0.0
    %v558 = vmax.f32 %v527, 0.0
    %v559 = vmax.f32 %v530, 0.0
    %v560 = vmax.f32 %v533, 0.0
    %v561 = vmax.f32 %v536, 0.0
    %v562 = vmax.f32 %v539, 0.0
    %v563 = vmax.f32 %v542, 0.0
    %v564 = vmax.f32 %v545, 0.0
    %v565 = vmax.f32 %v548, 0.0
    %566 = vmatpush.msra.mxu0 %v143
    %567 = vmatpush.msra.mxu0 %v142
    %568 = vmatpush.msra.mxu0 %v141
    %569 = vmatpush.msra.mxu0 %v140
    %570 = vmatpush.msra.mxu0 %v139
    %571 = vmatpush.msra.mxu0 %v138
    %572 = vmatpush.msra.mxu0 %v137
    %573 = vmatpush.msra.mxu0 %v136
    %574 = vmatpush.msra.mxu0 %v135
    %575 = vmatpush.msra.mxu0 %v134
    %576 = vmatpush.msra.mxu0 %v133
    %577 = vmatpush.msra.mxu0 %v132
    %578 = vmatpush.msra.mxu0 %v131
    %579 = vmatpush.msra.mxu0 %v130
    %580 = vmatpush.msra.mxu0 %v129
    %581 = vmatpush.msra.mxu0 %v128
    %582 = vmatmul.f32.gmra.mxu0 %v550
    %v583 = vpop.f32.mrf.mxu0
    %v584 = vadd.f32 %v437, %v583
    %585 = vmatmul.f32.gmra.mxu0 %v551
    %v586 = vpop.f32.mrf.mxu0
    %v587 = vadd.f32 %v440, %v586
    %588 = vmatmul.f32.gmra.mxu0 %v552
    %v589 = vpop.f32.mrf.mxu0
    %v590 = vadd.f32 %v443, %v589
    %591 = vmatmul.f32.gmra.mxu0 %v553
    %v592 = vpop.f32.mrf.mxu0
    %v593 = vadd.f32 %v446, %v592
    %594 = vmatmul.f32.gmra.mxu0 %v554
    %v595 = vpop.f32.mrf.mxu0
    %v596 = vadd.f32 %v449, %v595
    %597 = vmatmul.f32.gmra.mxu0 %v555
    %v598 = vpop.f32.mrf.mxu0
    %v599 = vadd.f32 %v452, %v598
    %600 = vmatmul.f32.gmra.mxu0 %v556
    %v601 = vpop.f32.mrf.mxu0
    %v602 = vadd.f32 %v455, %v601
    %603 = vmatmul.f32.gmra.mxu0 %v557
    %v604 = vpop.f32.mrf.mxu0
    %v605 = vadd.f32 %v458, %v604
    %606 = vmatmul.f32.gmra.mxu0 %v558
    %v607 = vpop.f32.mrf.mxu0
    %v608 = vadd.f32 %v461, %v607
    %609 = vmatmul.f32.gmra.mxu0 %v559
    %v610 = vpop.f32.mrf.mxu0
    %v611 = vadd.f32 %v464, %v610
    %612 = vmatmul.f32.gmra.mxu0 %v560
    %v613 = vpop.f32.mrf.mxu0
    %v614 = vadd.f32 %v467, %v613
    %615 = vmatmul.f32.gmra.mxu0 %v561
    %v616 = vpop.f32.mrf.mxu0
    %v617 = vadd.f32 %v470, %v616
    %618 = vmatmul.f32.gmra.mxu0 %v562
    %v619 = vpop.f32.mrf.mxu0
    %v620 = vadd.f32 %v473, %v619
    %621 = vmatmul.f32.gmra.mxu0 %v563
    %v622 = vpop.f32.mrf.mxu0
    %v623 = vadd.f32 %v476, %v622
    %624 = vmatmul.f32.gmra.mxu0 %v564
    %v625 = vpop.f32.mrf.mxu0
    %v626 = vadd.f32 %v479, %v625
    %627 = vmatmul.f32.gmra.mxu0 %v565
    %v628 = vpop.f32.mrf.mxu0
    %v629 = vadd.f32 %v482, %v628
    %630 = vdwg.mxu0
    %v631 = vperm.slane %v169, 0
    %v632 = vadd.f32 %v584, %v631
    %v633 = vadd.f32 %v587, %v631
    %v634 = vadd.f32 %v590, %v631
    %v635 = vadd.f32 %v593, %v631
    %v636 = vadd.f32 %v596, %v631
    %v637 = vadd.f32 %v599, %v631
    %v638 = vadd.f32 %v602, %v631
    %v639 = vadd.f32 %v605, %v631
    %v640 = vadd.f32 %v608, %v631
    %v641 = vadd.f32 %v611, %v631
    %v642 = vadd.f32 %v614, %v631
    %v643 = vadd.f32 %v617, %v631
    %v644 = vadd.f32 %v620, %v631
    %v645 = vadd.f32 %v623, %v631
    %v646 = vadd.f32 %v626, %v631
    %v647 = vadd.f32 %v629, %v631
    %v648 = vmax.f32 %v632, 0.0
    %v649 = vmax.f32 %v633, 0.0
    %v650 = vmax.f32 %v634, 0.0
    %v651 = vmax.f32 %v635, 0.0
    %v652 = vmax.f32 %v636, 0.0
    %v653 = vmax.f32 %v637, 0.0
    %v654 = vmax.f32 %v638, 0.0
    %v655 = vmax.f32 %v639, 0.0
    %v656 = vmax.f32 %v640, 0.0
    %v657 = vmax.f32 %v641, 0.0
    %v658 = vmax.f32 %v642, 0.0
    %v659 = vmax.f32 %v643, 0.0
    %v660 = vmax.f32 %v644, 0.0
    %v661 = vmax.f32 %v645, 0.0
    %v662 = vmax.f32 %v646, 0.0
    %v663 = vmax.f32 %v647, 0.0
    %v664 = vperm.slane %v170, 0
    %665 = vmatpush.msra.mxu0 %v160
    %666 = vmatpush.msra.mxu0 %v159
    %667 = vmatpush.msra.mxu0 %v158
    %668 = vmatpush.msra.mxu0 %v157
    %669 = vmatpush.msra.mxu0 %v156
    %670 = vmatpush.msra.mxu0 %v155
    %671 = vmatpush.msra.mxu0 %v154
    %672 = vmatpush.msra.mxu0 %v153
    %673 = vmatpush.msra.mxu0 %v152
    %674 = vmatpush.msra.mxu0 %v151
    %675 = vmatpush.msra.mxu0 %v150
    %676 = vmatpush.msra.mxu0 %v149
    %677 = vmatpush.msra.mxu0 %v148
    %678 = vmatpush.msra.mxu0 %v147
    %679 = vmatpush.msra.mxu0 %v146
    %680 = vmatpush.msra.mxu0 %v145
    %681 = vmatmul.f32.gmra.mxu0 %v648
    %v682 = vpop.f32.mrf.mxu0
    %v683 = vadd.f32 %v664, %v682
    %684 = vmatmul.f32.gmra.mxu0 %v649
    %v685 = vpop.f32.mrf.mxu0
    %v686 = vadd.f32 %v664, %v685
    %687 = vmatmul.f32.gmra.mxu0 %v650
    %v688 = vpop.f32.mrf.mxu0
    %v689 = vadd.f32 %v664, %v688
    %690 = vmatmul.f32.gmra.mxu0 %v651
    %v691 = vpop.f32.mrf.mxu0
    %v692 = vadd.f32 %v664, %v691
    %693 = vmatmul.f32.gmra.mxu0 %v652
    %v694 = vpop.f32.mrf.mxu0
    %v695 = vadd.f32 %v664, %v694
    %696 = vmatmul.f32.gmra.mxu0 %v653
    %v697 = vpop.f32.mrf.mxu0
    %v698 = vadd.f32 %v664, %v697
    %699 = vmatmul.f32.gmra.mxu0 %v654
    %v700 = vpop.f32.mrf.mxu0
    %v701 = vadd.f32 %v664, %v700
    %702 = vmatmul.f32.gmra.mxu0 %v655
    %v703 = vpop.f32.mrf.mxu0
    %v704 = vadd.f32 %v664, %v703
    %705 = vmatmul.f32.gmra.mxu0 %v656
    %v706 = vpop.f32.mrf.mxu0
    %v707 = vadd.f32 %v664, %v706
    %708 = vmatmul.f32.gmra.mxu0 %v657
    %v709 = vpop.f32.mrf.mxu0
    %v710 = vadd.f32 %v664, %v709
    %711 = vmatmul.f32.gmra.mxu0 %v658
    %v712 = vpop.f32.mrf.mxu0
    %v713 = vadd.f32 %v664, %v712
    %714 = vmatmul.f32.gmra.mxu0 %v659
    %v715 = vpop.f32.mrf.mxu0
    %v716 = vadd.f32 %v664, %v715
    %717 = vmatmul.f32.gmra.mxu0 %v660
    %v718 = vpop.f32.mrf.mxu0
    %v719 = vadd.f32 %v664, %v718
    %720 = vmatmul.f32.gmra.mxu0 %v661
    %v721 = vpop.f32.mrf.mxu0
    %v722 = vadd.f32 %v664, %v721
    %723 = vmatmul.f32.gmra.mxu0 %v662
    %v724 = vpop.f32.mrf.mxu0
    %v725 = vadd.f32 %v664, %v724
    %726 = vmatmul.f32.gmra.mxu0 %v663
    %v727 = vpop.f32.mrf.mxu0
    %v728 = vadd.f32 %v664, %v727
    %729 = vdwg.mxu0
    %730 = vst [vmem:[#allocation7] sm:$0xff] %v683
    %731 = vst [vmem:[#allocation7 + $0x8] sm:$0xff] %v686
    %732 = vst [vmem:[#allocation7 + $0x10] sm:$0xff] %v689
    %733 = vst [vmem:[#allocation7 + $0x18] sm:$0xff] %v692
    %734 = vst [vmem:[#allocation7 + $0x20] sm:$0xff] %v695
    %735 = vst [vmem:[#allocation7 + $0x28] sm:$0xff] %v698
    %736 = vst [vmem:[#allocation7 + $0x30] sm:$0xff] %v701
    %737 = vst [vmem:[#allocation7 + $0x38] sm:$0xff] %v704
    %738 = vst [vmem:[#allocation7 + $0x40] sm:$0xff] %v707
    %739 = vst [vmem:[#allocation7 + $0x48] sm:$0xff] %v710
    %740 = vst [vmem:[#allocation7 + $0x50] sm:$0xff] %v713
    %741 = vst [vmem:[#allocation7 + $0x58] sm:$0xff] %v716
    %742 = vst [vmem:[#allocation7 + $0x60] sm:$0xff] %v719
    %743 = vst [vmem:[#allocation7 + $0x68] sm:$0xff] %v722
    %744 = vst [vmem:[#allocation7 + $0x70] sm:$0xff] %v725
    %745 = vst [vmem:[#allocation7 + $0x78] sm:$0xff] %v728
    // Predicated region
    $region18: #{gaze_model_forward.1} parent=1 // pred_check
      _
    $region19: #{gaze_model_forward.1} parent=1 // pred_check_branch
      %747 = sbr.rel (0) target = $region21
    $region20: #{gaze_model_forward.1} parent=1 // pred_region
      %749 = vsyncadd [#allocation4], 0
      %s750 = sshll.u32 [#allocation7], 4
      %s751 = int_to_ptr.vmem [resolvable:$true] %s750
      %s752 = sshll.u32 %s2, 4
      %s753 = int_to_ptr.hbm [resolvable:$true] %s752
      %758 = dma.vmem_to_hbm [thread:$0]  %s751, 2048, %s753, [#allocation4], 128, 128, 8
    $region21: #{gaze_model_forward.1} parent=1 // pred_fallthru
      _
    // Predicated region
    $region22: #{gaze_model_forward.1} parent=1 // pred_check
      _
    $region23: #{gaze_model_forward.1} parent=1 // pred_check_branch
      %760 = sbr.rel (0) target = $region25
    $region24: #{gaze_model_forward.1} parent=1 // pred_region
      %762 = dma.done [#allocation4], 2048
    $region25: #{gaze_model_forward.1} parent=1 // pred_fallthru
      _
    %763 = vsyncpa [#allocation3], 1
    %764 = vsyncpa [#allocation6], 1
    %765 = vsyncpa [#allocation4], 1

</llo_original>
